<compile_context>
chip_gen: v7x
topology: tpu7x:2x2x1
jax: 0.10.0
libtpu: 0.0.40
codegen_flags: <defaults>
</compile_context>

<pallas_src>
import functools
import math

import jax
import jax.numpy as jnp
from jax import lax
from jax.experimental import pallas as pl
from jax.experimental.pallas import tpu as pltpu

COMPUTE_DTYPE = jnp.bfloat16   # matmul operand dtype; LN / softmax math stays f32
LN_EPS = 1e-12


def _row_tile(m, target=512):
    """Largest row tile <= target that divides m (falls back to full m)."""
    if m <= target:
        return m
    for t in (target, 256, 128, 64, 32, 16, 8):
        if m % t == 0:
            return t
    return m


# --------------------------------------------------------------------------
# Pallas kernels
# --------------------------------------------------------------------------
def _ln_kernel(x_ref, g_ref, b_ref, o_ref, *, eps):
    x = x_ref[...].astype(jnp.float32)
    mu = jnp.mean(x, axis=-1, keepdims=True)
    var = jnp.mean(jnp.square(x - mu), axis=-1, keepdims=True)
    y = (x - mu) * lax.rsqrt(var + eps)
    o_ref[...] = (y * g_ref[...] + b_ref[...]).astype(o_ref.dtype)


def layernorm(x, gamma, beta, out_dtype=None, eps=LN_EPS):
    """LayerNorm(x) over the last axis (no residual stream from HBM)."""
    M, H = x.shape
    tm = _row_tile(M, target=1024)
    out_dtype = out_dtype or x.dtype
    kernel = functools.partial(_ln_kernel, eps=eps)
    return pl.pallas_call(
        kernel,
        out_shape=jax.ShapeDtypeStruct((M, H), out_dtype),
        grid=(M // tm,),
        in_specs=[
            pl.BlockSpec((tm, H), lambda i: (i, 0)),
            pl.BlockSpec((1, H), lambda i: (0, 0)),
            pl.BlockSpec((1, H), lambda i: (0, 0)),
        ],
        out_specs=pl.BlockSpec((tm, H), lambda i: (i, 0)),
        compiler_params=pltpu.CompilerParams(dimension_semantics=("parallel",)),
    )(x, gamma.reshape(1, H), beta.reshape(1, H))


def _attn_block_kernel(x_ref, m_ref, wqkv_ref, bqkv_ref, wo_ref, bo_ref,
                       g_ref, b2_ref, o_ref, *, num_heads, scale, eps):
    """Fused per-batch self-attention block:
       LayerNorm( (softmax(QK^T/sqrt(d)+mask) V) @ Wo + bo + x )."""
    x = x_ref[0]                           # (S, H) bf16 residual / input
    mask = m_ref[0]                        # (1, S) f32 additive mask
    H = x.shape[1]
    d = H // num_heads

    # Fused Q|K|V projection; QKV stays in VMEM (never written to HBM).
    qkv = jnp.dot(x, wqkv_ref[...], preferred_element_type=jnp.float32) + bqkv_ref[...]
    qkv = qkv.astype(x.dtype)              # (S, 3H) bf16 for MXU-friendly head matmuls

    ctx_heads = []
    for h in range(num_heads):             # static unroll; heads live in lanes
        qh = qkv[:, h * d:(h + 1) * d]
        kh = qkv[:, H + h * d:H + (h + 1) * d]
        vh = qkv[:, 2 * H + h * d:2 * H + (h + 1) * d]
        # Q . K^T without materializing a transpose (contract last dims).
        s = lax.dot_general(qh, kh, (((1,), (1,)), ((), ())),
                            preferred_element_type=jnp.float32) * scale
        s = s + mask                       # f32, broadcast over query rows
        s = s - jnp.max(s, axis=-1, keepdims=True)
        p = jnp.exp(s)
        p = p * pl.reciprocal(jnp.sum(p, axis=-1, keepdims=True), approx=True)
        ctx_heads.append(
            jnp.dot(p.astype(vh.dtype), vh, preferred_element_type=jnp.float32))
    ctx = jnp.concatenate(ctx_heads, axis=-1).astype(x.dtype)   # (S, H) bf16

    # Output projection + residual + LayerNorm, all in VMEM.
    y = jnp.dot(ctx, wo_ref[...], preferred_element_type=jnp.float32) + bo_ref[...]
    y = y + x.astype(jnp.float32)
    mu = jnp.mean(y, axis=-1, keepdims=True)
    var = jnp.mean(jnp.square(y - mu), axis=-1, keepdims=True)
    yn = (y - mu) * lax.rsqrt(var + eps)
    o_ref[0] = (yn * g_ref[...] + b2_ref[...]).astype(o_ref.dtype)


def attention_block(x, add_mask, w_qkv, b_qkv, wo, bo, gamma, beta,
                    num_heads, eps=LN_EPS):
    """x: (B, S, H); add_mask: (B, S) f32 additive. Returns LN(attn(x)@Wo+bo+x)."""
    B, S, H = x.shape
    d = H // num_heads
    kernel = functools.partial(_attn_block_kernel, num_heads=num_heads,
                               scale=1.0 / math.sqrt(d), eps=eps)
    return pl.pallas_call(
        kernel,
        out_shape=jax.ShapeDtypeStruct((B, S, H), x.dtype),
        grid=(B,),
        in_specs=[
            pl.BlockSpec((1, S, H), lambda b: (b, 0, 0)),
            pl.BlockSpec((1, 1, S), lambda b: (b, 0, 0)),
            pl.BlockSpec((H, 3 * H), lambda b: (0, 0)),     # resident weights
            pl.BlockSpec((1, 3 * H), lambda b: (0, 0)),
            pl.BlockSpec((H, H), lambda b: (0, 0)),
            pl.BlockSpec((1, H), lambda b: (0, 0)),
            pl.BlockSpec((1, H), lambda b: (0, 0)),
            pl.BlockSpec((1, H), lambda b: (0, 0)),
        ],
        out_specs=pl.BlockSpec((1, S, H), lambda b: (b, 0, 0)),
        compiler_params=pltpu.CompilerParams(dimension_semantics=("parallel",)),
    )(x, add_mask.reshape(B, 1, S), w_qkv, b_qkv.reshape(1, 3 * H),
      wo, bo.reshape(1, H), gamma.reshape(1, H), beta.reshape(1, H))


def _ffn_kernel(x_ref, wi_ref, bi_ref, wf_ref, bf_ref, g_ref, b2_ref, o_ref, *, eps):
    x = x_ref[...]
    h = jnp.dot(x, wi_ref[...], preferred_element_type=jnp.float32) + bi_ref[...]
    # TODO(synk): HF BERT uses exact erf-GELU; tanh approximation used here.
    h = 0.5 * h * (1.0 + jnp.tanh(0.7978845608028654 * (h + 0.044715 * h * h * h)))
    y = jnp.dot(h.astype(wf_ref.dtype), wf_ref[...], preferred_element_type=jnp.float32)
    y = y + bf_ref[...] + x.astype(jnp.float32)            # residual add
    mu = jnp.mean(y, axis=-1, keepdims=True)
    var = jnp.mean(jnp.square(y - mu), axis=-1, keepdims=True)
    yn = (y - mu) * lax.rsqrt(var + eps)
    o_ref[...] = (yn * g_ref[...] + b2_ref[...]).astype(o_ref.dtype)


def ffn_layernorm(x, wi, bi, wf, bf, gamma, beta, eps=LN_EPS):
    """LayerNorm(GELU(x@wi+bi)@wf + bf + x); intermediate activation stays in VMEM."""
    M, H = x.shape
    I = wi.shape[1]
    tm = _row_tile(M, target=256)   # bound (tm, I) intermediate so it fits VMEM (v7x: 64 MiB)
    kernel = functools.partial(_ffn_kernel, eps=eps)
    return pl.pallas_call(
        kernel,
        out_shape=jax.ShapeDtypeStruct((M, H), x.dtype),
        grid=(M // tm,),
        in_specs=[
            pl.BlockSpec((tm, H), lambda i: (i, 0)),
            pl.BlockSpec((H, I), lambda i: (0, 0)),
            pl.BlockSpec((1, I), lambda i: (0, 0)),
            pl.BlockSpec((I, H), lambda i: (0, 0)),
            pl.BlockSpec((1, H), lambda i: (0, 0)),
            pl.BlockSpec((1, H), lambda i: (0, 0)),
            pl.BlockSpec((1, H), lambda i: (0, 0)),
        ],
        out_specs=pl.BlockSpec((tm, H), lambda i: (i, 0)),
        compiler_params=pltpu.CompilerParams(dimension_semantics=("parallel",)),
    )(x, wi, bi.reshape(1, I), wf, bf.reshape(1, H),
      gamma.reshape(1, H), beta.reshape(1, H))


# --------------------------------------------------------------------------
# Parameter init (deterministic, synthetic "pretrained" weights)
# --------------------------------------------------------------------------
def init_params(key, *, vocab, max_pos, type_vocab, hidden, layers, intermediate):
    def nrm(k, shape):
        return jax.random.normal(k, shape, dtype=jnp.float32) * 0.02

    keys = jax.random.split(key, 4 + layers)
    params = {
        "word_emb": nrm(keys[0], (vocab, hidden)),
        "pos_emb": nrm(keys[1], (max_pos, hidden)),
        "type_emb": nrm(keys[2], (type_vocab, hidden)),
        "emb_ln_g": jnp.ones((hidden,), jnp.float32),
        "emb_ln_b": jnp.zeros((hidden,), jnp.float32),
        "out_w": nrm(keys[3], (hidden, 1)),
        "out_b": jnp.zeros((1,), jnp.float32),
        "layers": [],
    }
    for li in range(layers):
        lk = jax.random.split(keys[4 + li], 6)
        wq = nrm(lk[0], (hidden, hidden))
        wk = nrm(lk[1], (hidden, hidden))
        wv = nrm(lk[2], (hidden, hidden))
        params["layers"].append(
            {
                # fused Q|K|V projection weight (H, 3H), bf16 matmul operands
                "w_qkv": jnp.concatenate([wq, wk, wv], axis=1).astype(COMPUTE_DTYPE),
                "b_qkv": jnp.zeros((3 * hidden,), jnp.float32),
                "wo": nrm(lk[3], (hidden, hidden)).astype(COMPUTE_DTYPE),
                "bo": jnp.zeros((hidden,), jnp.float32),
                "ln1_g": jnp.ones((hidden,), jnp.float32),
                "ln1_b": jnp.zeros((hidden,), jnp.float32),
                "wi": nrm(lk[4], (hidden, intermediate)).astype(COMPUTE_DTYPE),
                "bi": jnp.zeros((intermediate,), jnp.float32),
                "wf": nrm(lk[5], (intermediate, hidden)).astype(COMPUTE_DTYPE),
                "bf": jnp.zeros((hidden,), jnp.float32),
                "ln2_g": jnp.ones((hidden,), jnp.float32),
                "ln2_b": jnp.zeros((hidden,), jnp.float32),
            }
        )
    return params


# --------------------------------------------------------------------------
# BERTModel.forward equivalent (inference: dropout = identity)
# --------------------------------------------------------------------------
def bert_model_forward(params, ids, mask, token_type_ids, *, num_heads):
    B, S = ids.shape
    H = params["word_emb"].shape[1]

    # --- embeddings (gathers are XLA glue; LayerNorm runs in a Pallas kernel) ---
    pos_ids = jnp.arange(S)
    emb = (
        params["word_emb"][ids]
        + params["pos_emb"][pos_ids][None, :, :]
        + params["type_emb"][token_type_ids]
    )                                                       # (B, S, H) f32
    x = layernorm(emb.reshape(B * S, H), params["emb_ln_g"], params["emb_ln_b"],
                  out_dtype=COMPUTE_DTYPE)
    # embedding dropout: identity at inference

    add_mask = (1.0 - mask.astype(jnp.float32)) * -10000.0  # (B, S) f32 additive mask

    for layer in params["layers"]:
        # fully-fused self-attention block (QKV proj + attention + out proj + res + LN)
        x3 = attention_block(x.reshape(B, S, H), add_mask,
                             layer["w_qkv"], layer["b_qkv"],
                             layer["wo"], layer["bo"],
                             layer["ln1_g"], layer["ln1_b"], num_heads)
        # fully-fused feed-forward block (wi / GELU / wf + residual + LN)
        x = ffn_layernorm(x3.reshape(B * S, H), layer["wi"], layer["bi"],
                          layer["wf"], layer["bf"], layer["ln2_g"], layer["ln2_b"])

    last_hidden_state = x.reshape(B, S, H)
    feature = last_hidden_state[:, 0, :].astype(jnp.float32)   # CLS token, (B, H)
    # self.bert_drop(feature): identity at inference (p=0.3 only active in train)
    # Final Linear(H, 1): N=1 is too small for a useful MXU pass -> plain JAX.
    output = feature @ params["out_w"] + params["out_b"]       # (B, 1) f32
    return output


# --------------------------------------------------------------------------
if __name__ == "__main__":
    B, S, HIDDEN, LAYERS, HEADS, INTER = 2, 8, 32, 2, 4, 64
    VOCAB, MAX_POS, TYPE_VOCAB = 128, 64, 2

    root = jax.random.PRNGKey(0)
    pkey, ikey = jax.random.split(root)
    params = init_params(
        pkey, vocab=VOCAB, max_pos=MAX_POS, type_vocab=TYPE_VOCAB,
        hidden=HIDDEN, layers=LAYERS, intermediate=INTER,
    )

    ids = jax.random.randint(ikey, (B, S), 0, VOCAB, dtype=jnp.int32)
    mask = jnp.ones((B, S), dtype=jnp.int32).at[1, -2:].set(0)   # pad last 2 tokens of seq 1
    token_type_ids = jnp.zeros((B, S), dtype=jnp.int32)

    out = bert_model_forward(params, ids, mask, token_type_ids, num_heads=HEADS)
    out = jax.block_until_ready(out)
    assert out.shape == (B, 1) and out.dtype == jnp.float32
    print("KERNEL_OK")
</pallas_src>

<mosaic_0001>
module attributes {stable_mosaic.version = 11 : i64} {
  func.func @_ln_kernel(%arg0: i32, %arg1: memref<16x32xf32, #tpu.memory_space<vmem>>, %arg2: memref<1x32xf32, #tpu.memory_space<vmem>>, %arg3: memref<1x32xf32, #tpu.memory_space<vmem>>, %arg4: memref<16x32xbf16, #tpu.memory_space<vmem>>) attributes {dimension_semantics = [#tpu.dimension_semantics<parallel>], iteration_bounds = array<i64: 1>, scalar_prefetch = 0 : i64, scratch_operands = 0 : i64, tpu.core_type = #tpu.core_type<tc>, window_params = [{transform_indices = @transform_0, window_bounds = array<i64: 16, 32>}, {pipeline_mode = #tpu.pipeline_mode<synchronous>, transform_indices = @transform_1, window_bounds = array<i64: 1, 32>}, {pipeline_mode = #tpu.pipeline_mode<synchronous>, transform_indices = @transform_2, window_bounds = array<i64: 1, 32>}, {transform_indices = @transform_3, window_bounds = array<i64: 16, 32>}]} {
    %c0 = arith.constant 0 : index
    %c0_0 = arith.constant 0 : index
    %0 = vector.load %arg1[%c0, %c0_0] : memref<16x32xf32, #tpu.memory_space<vmem>>, vector<16x32xf32>
    %cst = arith.constant dense<0.000000e+00> : vector<16xf32>
    %1 = vector.multi_reduction <add>, %0, %cst [1] : vector<16x32xf32> to vector<16xf32>
    %2 = vector.shape_cast %1 : vector<16xf32> to vector<16x1xf32>
    %cst_1 = arith.constant 3.200000e+01 : f32
    %3 = vector.broadcast %cst_1 : f32 to vector<16x1xf32>
    %4 = arith.divf %2, %3 : vector<16x1xf32>
    %5 = vector.broadcast %4 : vector<16x1xf32> to vector<16x32xf32>
    %6 = arith.subf %0, %5 : vector<16x32xf32>
    %7 = arith.mulf %6, %6 : vector<16x32xf32>
    %cst_2 = arith.constant dense<0.000000e+00> : vector<16xf32>
    %8 = vector.multi_reduction <add>, %7, %cst_2 [1] : vector<16x32xf32> to vector<16xf32>
    %9 = vector.shape_cast %8 : vector<16xf32> to vector<16x1xf32>
    %cst_3 = arith.constant 3.200000e+01 : f32
    %10 = vector.broadcast %cst_3 : f32 to vector<16x1xf32>
    %11 = arith.divf %9, %10 : vector<16x1xf32>
    %12 = vector.broadcast %4 : vector<16x1xf32> to vector<16x32xf32>
    %13 = arith.subf %0, %12 : vector<16x32xf32>
    %cst_4 = arith.constant 9.99999996E-13 : f32
    %14 = vector.broadcast %cst_4 : f32 to vector<16x1xf32>
    %15 = arith.addf %11, %14 : vector<16x1xf32>
    %16 = math.rsqrt %15 : vector<16x1xf32>
    %17 = vector.broadcast %16 : vector<16x1xf32> to vector<16x32xf32>
    %18 = arith.mulf %13, %17 : vector<16x32xf32>
    %c0_5 = arith.constant 0 : index
    %c0_6 = arith.constant 0 : index
    %19 = vector.load %arg2[%c0_5, %c0_6] : memref<1x32xf32, #tpu.memory_space<vmem>>, vector<1x32xf32>
    %20 = vector.broadcast %19 : vector<1x32xf32> to vector<16x32xf32>
    %21 = arith.mulf %18, %20 : vector<16x32xf32>
    %c0_7 = arith.constant 0 : index
    %c0_8 = arith.constant 0 : index
    %22 = vector.load %arg3[%c0_7, %c0_8] : memref<1x32xf32, #tpu.memory_space<vmem>>, vector<1x32xf32>
    %23 = vector.broadcast %22 : vector<1x32xf32> to vector<16x32xf32>
    %24 = arith.addf %21, %23 : vector<16x32xf32>
    %25 = arith.truncf %24 : vector<16x32xf32> to vector<16x32xbf16>
    %c0_9 = arith.constant 0 : index
    %c0_10 = arith.constant 0 : index
    %26 = vector.load %arg4[%c0_9, %c0_10] : memref<16x32xbf16, #tpu.memory_space<vmem>>, vector<16x32xbf16>
    tpu.vector_store %arg4[%c0_9, %c0_10], %25 {strides = array<i32>} : memref<16x32xbf16, #tpu.memory_space<vmem>>, vector<16x32xbf16>,
    return
  }
  func.func @transform_0(%arg0: i32) -> (i32, i32) {
    %c0_i32 = arith.constant 0 : i32
    %c0_i32_0 = arith.constant 0 : i32
    return %arg0, %c0_i32 : i32, i32
  }
  func.func @transform_1(%arg0: i32) -> (i32, i32) {
    %c0_i32 = arith.constant 0 : i32
    %c0_i32_0 = arith.constant 0 : i32
    %c0_i32_1 = arith.constant 0 : i32
    return %c0_i32, %c0_i32_0 : i32, i32
  }
  func.func @transform_2(%arg0: i32) -> (i32, i32) {
    %c0_i32 = arith.constant 0 : i32
    %c0_i32_0 = arith.constant 0 : i32
    %c0_i32_1 = arith.constant 0 : i32
    return %c0_i32, %c0_i32_0 : i32, i32
  }
  func.func @transform_3(%arg0: i32) -> (i32, i32) {
    %c0_i32 = arith.constant 0 : i32
    %c0_i32_0 = arith.constant 0 : i32
    return %arg0, %c0_i32 : i32, i32
  }
}

</mosaic_0001>

<llo_original>
// kernel: tpu_custom_call.1
$region0: #{tpu_custom_call.1}
  #allocation0 [shape = 'u32[]', space=smem, size = 0x4, offset = 0x4, fixed_abs, tag = 'smem constant byte address 0x4 - core index']
  #allocation1 [shape = 'u32[144,128]{1,0:T(1,128)}', space=vmem, size = 0x12000, scoped, tag = 'internal scratch']
  %s0 = inlined_call_operand.hbm [shape: f32[16,32], index: 0, kind: input, shape index: {}]
  %s1 = inlined_call_operand.vmem [shape: f32[1,32], index: 1, kind: input, shape index: {}]
  %s2 = inlined_call_operand.vmem [shape: f32[1,32], index: 2, kind: input, shape index: {}]
  %s3 = inlined_call_operand.hbm [shape: bf16[16,32], index: 3, kind: output, shape index: {}]
  %s4 = sld [smem:[#allocation0]]
  $region26: #{tpu_custom_call.1} parent=0
    _
  %s6 = ssub.s32 1, %s4
  %s7 = scalar_select 0, %s6, %s4
  $region1: #{tpu_custom_call.1} parent=0
    #allocation2 [shape = 'u8[8192]{0}', space=vmem, size = 0x2000, scoped, tag = 'input window, operand 0, single buffered']
    #allocation3 [shape = 's32[1]{0}', space=sflag, size = 0x4, scoped, tag = 'scoped memory for tpu_custom_call.1']
    #allocation4 [shape = 's32[1]{0}', space=sflag, size = 0x4, scoped, tag = 'scoped memory for tpu_custom_call.1']
    #allocation5 [shape = 'u8[4096]{0}', space=vmem, size = 0x1000, scoped, tag = 'output window, operand 0, single buffered']
    %8 = vsyncpa [#allocation3], 0
    %9 = vsyncpa [#allocation4], 0
    // Predicated region
    $region2: #{tpu_custom_call.1} parent=1 // pred_check
      _
    $region3: #{tpu_custom_call.1} parent=1 // pred_check_branch
      %11 = sbr.rel (0) target = $region5
    $region4: #{tpu_custom_call.1} parent=1 // pred_region
      %s13 = ssub.s32 256, 256
      %14 = vsyncadd [#allocation3], %s13
      %s15 = sshll.u32 [#allocation2], 4
      %s16 = int_to_ptr.vmem [resolvable:$true] %s15
      %21 = dma.hbm_to_vmem [thread:$0]  %s0, 256, %s16, [#allocation3], 128, 128, 8
    $region5: #{tpu_custom_call.1} parent=1 // pred_fallthru
      _
    // Predicated region
    $region6: #{tpu_custom_call.1} parent=1 // pred_check
      _
    $region7: #{tpu_custom_call.1} parent=1 // pred_check_branch
      %23 = sbr.rel (0) target = $region9
    $region8: #{tpu_custom_call.1} parent=1 // pred_region
      _
    $region9: #{tpu_custom_call.1} parent=1 // pred_fallthru
      _
    // Predicated region
    $region10: #{tpu_custom_call.1} parent=1 // pred_check
      _
    $region11: #{tpu_custom_call.1} parent=1 // pred_check_branch
      %25 = sbr.rel (0) target = $region13
    $region12: #{tpu_custom_call.1} parent=1 // pred_region
      _
    $region13: #{tpu_custom_call.1} parent=1 // pred_fallthru
      _
    // Predicated region
    $region14: #{tpu_custom_call.1} parent=1 // pred_check
      _
    $region15: #{tpu_custom_call.1} parent=1 // pred_check_branch
      %27 = sbr.rel (0) target = $region17
    $region16: #{tpu_custom_call.1} parent=1 // pred_region
      %28 = dma.done [#allocation3], 256
    $region17: #{tpu_custom_call.1} parent=1 // pred_fallthru
      _
    %v29 = vld [vmem:[#allocation2] sm:$0xff]
    %v30 = vld [vmem:[#allocation2 + $0x8] sm:$0xff]
    %vm31 = vcmask 261120
    %v32 = vsel %vm31, %v29, 0.0
    %33 = vadd.xlane.f32.xlu0 %v32
    %v34 = vpop.xlane.xlu0 %33
    %v35 = vsel %vm31, %v30, 0.0
    %36 = vadd.xlane.f32.xlu0 %v35
    %v37 = vpop.xlane.xlu0 %36
    %v38 = vrcp.pop 32.0
    %v39 = vmul.f32 %v34, %v38
    %v40 = vmul.f32 %v37, %v38
    %v41 = vsub.f32 %v29, %v39
    %v42 = vsub.f32 %v30, %v40
    %v43 = vmul.f32 %v41, %v41
    %v44 = vmul.f32 %v42, %v42
    %v45 = vsel %vm31, %v43, 0.0
    %46 = vadd.xlane.f32.xlu0 %v45
    %v47 = vpop.xlane.xlu0 %46
    %v48 = vsel %vm31, %v44, 0.0
    %49 = vadd.xlane.f32.xlu0 %v48
    %v50 = vpop.xlane.xlu0 %49
    %v51 = vmul.f32 %v47, %v38
    %v52 = vmul.f32 %v50, %v38
    %v53 = vadd.f32 %v51, 1e-12
    %v54 = vadd.f32 %v52, 1e-12
    %v55 = vrsqrt.pop %v53
    %v56 = vrsqrt.pop %v54
    %v57 = vmul.f32 %v41, %v55
    %v58 = vmul.f32 %v42, %v56
    %v59 = vld [vmem:[%s1] sm:$0x1]
    %v61 = vlaneseq
    %v62 = vshrl.u32 %v61, 7
    %v63 = vsub.s32 0, %v62
    %v64 = vrot.slane %v59, %v63
    %v66 = vmul.f32 %v57, %v64
    %v67 = vmul.f32 %v58, %v64
    %v68 = vld [vmem:[%s2] sm:$0x1]
    %v70 = vlaneseq
    %v71 = vshrl.u32 %v70, 7
    %v72 = vsub.s32 0, %v71
    %v73 = vrot.slane %v68, %v72
    %v75 = vadd.f32 %v66, %v73
    %v76 = vadd.f32 %v67, %v73
    %v77 = vpack.c.bf16 %v76, %v75
    %v79 = vunpack.c.l.b16 %v77
    %v80 = vunpack.c.h.b16 %v77
    %v81 = vpack.c.b16 %v79, %v79
    %v82 = vpack.c.b16 %v80, %v80
    %vm85 = vcmask 257024
    %86 = vst.msk [vmem:[#allocation5] sm:$0xf] %vm85, %v81
    %87 = vst.msk [vmem:[#allocation5 + $0x4] sm:$0xf] %vm85, %v82
    // Predicated region
    $region18: #{tpu_custom_call.1} parent=1 // pred_check
      _
    $region19: #{tpu_custom_call.1} parent=1 // pred_check_branch
      %89 = sbr.rel (0) target = $region21
    $region20: #{tpu_custom_call.1} parent=1 // pred_region
      %s91 = ssub.s32 128, 128
      %92 = vsyncadd [#allocation4], %s91
      %s93 = sshll.u32 [#allocation5], 4
      %s94 = int_to_ptr.vmem [resolvable:$true] %s93
      %99 = dma.vmem_to_hbm [thread:$0]  %s94, 128, %s3, [#allocation4], 64, 64, 4
    $region21: #{tpu_custom_call.1} parent=1 // pred_fallthru
      _
    // Predicated region
    $region22: #{tpu_custom_call.1} parent=1 // pred_check
      _
    $region23: #{tpu_custom_call.1} parent=1 // pred_check_branch
      %101 = sbr.rel (0) target = $region25
    $region24: #{tpu_custom_call.1} parent=1 // pred_region
      %102 = dma.done [#allocation4], 128
    $region25: #{tpu_custom_call.1} parent=1 // pred_fallthru
      _
    %103 = vsyncpa [#allocation3], 1
    %104 = vsyncpa [#allocation4], 1

</llo_original>
